<compile_context>
chip_gen: v5e
topology: v5e:2x2
jax: 0.10.0
libtpu: 0.0.40
codegen_flags: <defaults>
</compile_context>

<pallas_src>
import functools

import jax
import jax.numpy as jnp
from jax import lax
from jax.experimental import pallas as pl
from jax.experimental.pallas import tpu as pltpu


def _round_up(v, m):
    return (v + m - 1) // m * m


def _quantize_kernel(order_ref, ssel_ref, x_ref, en2_ref, esq_ref, w_ref,
                     out_ref, diff_ref, *, t_real, t_tile):
    # order_ref: (B,) SMEM   grid-position -> batch-index permutation (codebook-grouped)
    # ssel_ref : (B,) SMEM   codebook id per grid position (used only by index_maps)
    # x_ref    : (1, tT, D)  VMEM  input rows for this (batch, T-tile), f32
    # en2_ref  : (1, D, Ep)  VMEM  2 * batch-norm-normalized codebook (transposed)
    # esq_ref  : (1, 1, Ep)  VMEM  |normalized code|^2 per code (padded codes = 1e30), f32
    # w_ref    : (1, Ep, D)  VMEM  raw selected codebook (lookup values), f32
    # out_ref  : (1, tT, D)  VMEM  quantized rows (== (quantize + quantize_1)/2 exactly)
    # diff_ref : (1, 1, 1, D) VMEM lane-dense per-block partial of sum((q - x)^2)
    del order_ref, ssel_ref
    x = x_ref[0]                                   # (tT, D)
    en2 = en2_ref[0]                               # (D, Ep)
    esq = esq_ref[0]                               # (1, Ep)
    w = w_ref[0]                                   # (Ep, D)

    # Distance score: per-row |x|^2 dropped; the -2 factor is folded into en2.
    #   score = |en|^2 - 2 * x @ en ;  argmin(score) == argmin(full dist)
    xe = jnp.dot(x.astype(en2.dtype), en2, preferred_element_type=jnp.float32)  # MXU
    score = esq - xe                               # (tT, Ep) f32

    # argmin over codes, first-occurrence tie-break (matches torch (-dist).max(2)).
    tT, Ep = score.shape
    iota = lax.broadcasted_iota(jnp.int32, (tT, Ep), 1)
    minval = jnp.min(score, axis=-1, keepdims=True)
    ind = jnp.min(jnp.where(score == minval, iota, Ep), axis=-1, keepdims=True)

    # Embedding lookup as a one-hot matmul against the RAW (un-normalized) codebook.
    onehot = (iota == ind).astype(w.dtype)
    q = jnp.dot(onehot, w, preferred_element_type=jnp.float32)   # (tT, D) f32

    # Forward: quantize_1 = x + (q - x)  =>  (q + quantize_1)/2 == q exactly.
    # TODO(synk): straight-through gradient semantics need a custom VJP if this kernel
    # is ever differentiated (forward values are exact).
    out_ref[0] = q.astype(out_ref.dtype)

    # Per-block diff partial, reduced over rows only (lane-dense (1, D) store).
    d = q - x
    if t_real % t_tile != 0:          # only the last (ragged) T tile needs masking
        row = pl.program_id(1) * t_tile + lax.broadcasted_iota(jnp.int32, d.shape, 0)
        d = jnp.where(row < t_real, d, 0.0)
    dd = jnp.sum(d * d, axis=0, keepdims=True)                   # (1, D) f32
    diff_ref[...] = dd.reshape(1, 1, 1, dd.shape[-1])


def quantize_forward(x, embeddings, input_code_select, *, t_tile=1024,
                     dist_dtype=jnp.float32, out_dtype=None):
    """x: (B, T, D) f32.  embeddings: (2, n_embed, dim) f32 (the two nn.Embedding weights).
    input_code_select: list of B strings whose last char selects the codebook (char - 5).
    Returns (out, diff, embed_ind_select)."""
    B, T, D = x.shape
    K, E, D2 = embeddings.shape
    assert D2 == D and len(input_code_select) == B
    out_dtype = x.dtype if out_dtype is None else out_dtype

    # Host-side codebook selector (static at trace time), as in the torch reference.
    sel_list = [int(name[-1]) - 5 for name in input_code_select]
    sel = jnp.asarray(sel_list, dtype=jnp.int32)                        # (B,)

    # Group batch elements by codebook id via an index-map permutation so consecutive
    # grid steps reuse the resident codebook blocks.  No extra HBM pass over x/out.
    order_list = sorted(range(B), key=lambda i: sel_list[i])
    order = jnp.asarray(order_list, dtype=jnp.int32)                    # grid b -> batch
    ssel = jnp.asarray([sel_list[i] for i in order_list], jnp.int32)    # grid b -> codebook

    # torch.norm(stacked_selected_codebooks, dim=0) depends only on per-codebook counts:
    #   nrm = sqrt(sum_k count_k * W_k.T^2)   (zero nrm inherited from the reference)
    counts = jnp.asarray([float(sel_list.count(k)) for k in range(K)], jnp.float32)
    wT = jnp.transpose(embeddings, (0, 2, 1))                           # (K, D, E)
    nrm = jnp.sqrt(jnp.sum(counts[:, None, None] * wT * wT, axis=0))    # (D, E)
    en = wT / nrm                                                       # normalized
    esq = jnp.sum(en * en, axis=1)                                      # (K, E) hoisted |en|^2
    en2 = (2.0 * en).astype(dist_dtype)                                 # fold the -2 scale

    # Only the SMALL codebook operands get lane padding (E -> multiple of 128); x / out
    # keep their real last dim D so kernel HBM traffic is not inflated and no padded
    # copies of the big arrays are materialized.
    Ep = _round_up(E, 128)
    en2_p = jnp.pad(en2, ((0, 0), (0, 0), (0, Ep - E)))                 # (K, D, Ep)
    esq_p = jnp.pad(esq, ((0, 0), (0, Ep - E)),
                    constant_values=1e30).reshape(K, 1, Ep)             # (K, 1, Ep)
    w_p = jnp.pad(embeddings, ((0, 0), (0, Ep - E), (0, 0)))            # (K, Ep, D)

    # T tiling: multiple of 8 (sublane), as large as possible (mem-bound), but keep the
    # (tT, Ep) score/one-hot intermediates bounded in VMEM for very large codebooks.
    max_rows = max(8, ((1 << 22) // Ep) // 8 * 8)
    tT = min(_round_up(t_tile, 8), _round_up(T, 8), max_rows)
    nT = -(-T // tT)

    kernel = functools.partial(_quantize_kernel, t_real=T, t_tile=tT)

    out, diff_part = pl.pallas_call(
        kernel,
        out_shape=(jax.ShapeDtypeStruct((B, T, D), out_dtype),
                   jax.ShapeDtypeStruct((B, nT, 1, D), jnp.float32)),
        grid_spec=pltpu.PrefetchScalarGridSpec(
            num_scalar_prefetch=2,          # order + ssel land in SMEM, drive index_maps
            grid=(B, nT),
            in_specs=[
                pl.BlockSpec((1, tT, D), lambda b, t, o, s: (o[b], t, 0)),
                pl.BlockSpec((1, D, Ep), lambda b, t, o, s: (s[b], 0, 0)),
                pl.BlockSpec((1, 1, Ep), lambda b, t, o, s: (s[b], 0, 0)),
                pl.BlockSpec((1, Ep, D), lambda b, t, o, s: (s[b], 0, 0)),
            ],
            out_specs=[
                pl.BlockSpec((1, tT, D), lambda b, t, o, s: (o[b], t, 0)),
                pl.BlockSpec((1, 1, 1, D), lambda b, t, o, s: (o[b], t, 0, 0)),
            ],
        ),
        # No cross-step state (diff is a per-block partial) -> both axes parallel for
        # full megacore sharding on v7x.
        compiler_params=pltpu.CompilerParams(
            dimension_semantics=("parallel", "parallel")),
    )(order, ssel, x, en2_p, esq_p, w_p)

    diff = jnp.sum(diff_part) / (B * T * D)                             # torch .mean()
    return out, diff, sel


if __name__ == "__main__":
    key = jax.random.PRNGKey(0)
    dim, n_embed = 32, 64
    B, T = 2, 16

    k_emb, k_x = jax.random.split(key)
    # nn.Embedding default init is N(0, 1); two codebooks of shape (n_embed, dim)
    embeddings = jax.random.normal(k_emb, (2, n_embed, dim), dtype=jnp.float32)
    x = jax.random.normal(k_x, (B, T, dim), dtype=jnp.float32)

    # names whose last char - 5 selects codebook 0 and 1 respectively
    input_code_select = ["code_5", "code_6"]

    out, diff, sel = quantize_forward(x, embeddings, input_code_select)
    jax.block_until_ready((out, diff, sel))
    assert out.shape == (B, T, dim)
    assert diff.shape == ()
    assert sel.shape == (B,)
    assert bool(jnp.all(jnp.isfinite(out))) and bool(jnp.isfinite(diff))
    print("KERNEL_OK")
</pallas_src>

<mosaic_0001>
module attributes {stable_mosaic.version = 11 : i64} {
  func.func @_quantize_kernel(%arg0: i32, %arg1: i32, %arg2: memref<2xi32, #tpu.memory_space<smem>>, %arg3: memref<2xi32, #tpu.memory_space<smem>>, %arg4: memref<1x16x32xf32, #tpu.memory_space<vmem>>, %arg5: memref<1x32x128xf32, #tpu.memory_space<vmem>>, %arg6: memref<1x1x128xf32, #tpu.memory_space<vmem>>, %arg7: memref<1x128x32xf32, #tpu.memory_space<vmem>>, %arg8: memref<1x16x32xf32, #tpu.memory_space<vmem>>, %arg9: memref<1x1x1x32xf32, #tpu.memory_space<vmem>>) attributes {dimension_semantics = [#tpu.dimension_semantics<parallel>, #tpu.dimension_semantics<parallel>], iteration_bounds = array<i64: 2, 1>, scalar_prefetch = 2 : i64, scratch_operands = 0 : i64, tpu.core_type = #tpu.core_type<tc>, window_params = [{transform_indices = @transform_0, window_bounds = array<i64: 1, 16, 32>}, {transform_indices = @transform_1, window_bounds = array<i64: 1, 32, 128>}, {transform_indices = @transform_2, window_bounds = array<i64: 1, 1, 128>}, {transform_indices = @transform_3, window_bounds = array<i64: 1, 128, 32>}, {transform_indices = @transform_4, window_bounds = array<i64: 1, 16, 32>}, {transform_indices = @transform_5, window_bounds = array<i64: 1, 1, 1, 32>}]} {
    %c0 = arith.constant 0 : index
    %c0_0 = arith.constant 0 : index
    %c0_1 = arith.constant 0 : index
    %0 = vector.load %arg4[%c0, %c0_0, %c0_1] : memref<1x16x32xf32, #tpu.memory_space<vmem>>, vector<1x16x32xf32>
    %1 = vector.shape_cast %0 : vector<1x16x32xf32> to vector<16x32xf32>
    %c0_2 = arith.constant 0 : index
    %c0_3 = arith.constant 0 : index
    %c0_4 = arith.constant 0 : index
    %2 = vector.load %arg5[%c0_2, %c0_3, %c0_4] : memref<1x32x128xf32, #tpu.memory_space<vmem>>, vector<1x32x128xf32>
    %3 = vector.shape_cast %2 : vector<1x32x128xf32> to vector<32x128xf32>
    %c0_5 = arith.constant 0 : index
    %c0_6 = arith.constant 0 : index
    %c0_7 = arith.constant 0 : index
    %4 = vector.load %arg6[%c0_5, %c0_6, %c0_7] : memref<1x1x128xf32, #tpu.memory_space<vmem>>, vector<1x1x128xf32>
    %5 = vector.shape_cast %4 : vector<1x1x128xf32> to vector<1x128xf32>
    %c0_8 = arith.constant 0 : index
    %c0_9 = arith.constant 0 : index
    %c0_10 = arith.constant 0 : index
    %6 = vector.load %arg7[%c0_8, %c0_9, %c0_10] : memref<1x128x32xf32, #tpu.memory_space<vmem>>, vector<1x128x32xf32>
    %7 = vector.shape_cast %6 : vector<1x128x32xf32> to vector<128x32xf32>
    %cst = arith.constant dense<0.000000e+00> : vector<16x128xf32>
    %8 = tpu.matmul %1, %3, %cst {dimension_numbers = #tpu.dot_dimension_numbers<[1], [0], [0], [1], [0, 0, 1, 1], [], []>} : vector<16x32xf32>, vector<32x128xf32>, vector<16x128xf32> -> vector<16x128xf32>
    %9 = vector.broadcast %5 : vector<1x128xf32> to vector<16x128xf32>
    %10 = arith.subf %9, %8 : vector<16x128xf32>
    %11 = tpu.iota {dimensions = array<i32: 1>} : vector<16x128xi32>
    %cst_11 = arith.constant dense<0x7F800000> : vector<16xf32>
    %12 = vector.multi_reduction <minimumf>, %10, %cst_11 [1] : vector<16x128xf32> to vector<16xf32>
    %13 = vector.shape_cast %12 : vector<16xf32> to vector<16x1xf32>
    %14 = vector.broadcast %13 : vector<16x1xf32> to vector<16x128xf32>
    %15 = arith.cmpf oeq, %10, %14 : vector<16x128xf32>
    %c128_i32 = arith.constant 128 : i32
    %16 = vector.broadcast %c128_i32 : i32 to vector<16x128xi32>
    %17 = arith.select %15, %11, %16 : vector<16x128xi1>, vector<16x128xi32>
    %cst_12 = arith.constant dense<2147483647> : vector<16xi32>
    %18 = vector.multi_reduction <minsi>, %17, %cst_12 [1] : vector<16x128xi32> to vector<16xi32>
    %19 = vector.shape_cast %18 : vector<16xi32> to vector<16x1xi32>
    %20 = vector.broadcast %19 : vector<16x1xi32> to vector<16x128xi32>
    %21 = arith.cmpi eq, %11, %20 : vector<16x128xi32>
    %22 = arith.extui %21 : vector<16x128xi1> to vector<16x128xi32>
    %23 = arith.sitofp %22 : vector<16x128xi32> to vector<16x128xf32>
    %cst_13 = arith.constant dense<0.000000e+00> : vector<16x32xf32>
    %24 = tpu.matmul %23, %7, %cst_13 {dimension_numbers = #tpu.dot_dimension_numbers<[1], [0], [0], [1], [0, 0, 1, 1], [], []>} : vector<16x128xf32>, vector<128x32xf32>, vector<16x32xf32> -> vector<16x32xf32>
    %c0_14 = arith.constant 0 : index
    %c0_15 = arith.constant 0 : index
    %c0_16 = arith.constant 0 : index
    %25 = vector.load %arg8[%c0_14, %c0_15, %c0_16] : memref<1x16x32xf32, #tpu.memory_space<vmem>>, vector<1x16x32xf32>
    %26 = vector.shape_cast %25 : vector<1x16x32xf32> to vector<16x32xf32>
    %27 = vector.shape_cast %24 : vector<16x32xf32> to vector<1x16x32xf32>
    tpu.vector_store %arg8[%c0_14, %c0_15, %c0_16], %27 {strides = array<i32>} : memref<1x16x32xf32, #tpu.memory_space<vmem>>, vector<1x16x32xf32>,
    %28 = arith.subf %24, %1 : vector<16x32xf32>
    %29 = arith.mulf %28, %28 : vector<16x32xf32>
    %cst_17 = arith.constant dense<0.000000e+00> : vector<32xf32>
    %30 = vector.multi_reduction <add>, %29, %cst_17 [0] : vector<16x32xf32> to vector<32xf32>
    %31 = vector.shape_cast %30 : vector<32xf32> to vector<1x32xf32>
    %32 = vector.shape_cast %31 : vector<1x32xf32> to vector<1x1x1x32xf32>
    %c0_18 = arith.constant 0 : index
    %c0_19 = arith.constant 0 : index
    %c0_20 = arith.constant 0 : index
    %c0_21 = arith.constant 0 : index
    %33 = vector.load %arg9[%c0_18, %c0_19, %c0_20, %c0_21] : memref<1x1x1x32xf32, #tpu.memory_space<vmem>>, vector<1x1x1x32xf32>
    tpu.vector_store %arg9[%c0_18, %c0_19, %c0_20, %c0_21], %32 {strides = array<i32>} : memref<1x1x1x32xf32, #tpu.memory_space<vmem>>, vector<1x1x1x32xf32>,
    return
  }
  func.func @transform_0(%arg0: i32, %arg1: i32, %arg2: memref<2xi32, #tpu.memory_space<smem>>, %arg3: memref<2xi32, #tpu.memory_space<smem>>) -> (i32, i32, i32) {
    %0 = arith.index_cast %arg0 : i32 to index
    %1 = memref.load %arg2[%0] : memref<2xi32, #tpu.memory_space<smem>>
    %c0_i32 = arith.constant 0 : i32
    %c0_i32_0 = arith.constant 0 : i32
    return %1, %arg1, %c0_i32 : i32, i32, i32
  }
  func.func @transform_1(%arg0: i32, %arg1: i32, %arg2: memref<2xi32, #tpu.memory_space<smem>>, %arg3: memref<2xi32, #tpu.memory_space<smem>>) -> (i32, i32, i32) {
    %0 = arith.index_cast %arg0 : i32 to index
    %1 = memref.load %arg3[%0] : memref<2xi32, #tpu.memory_space<smem>>
    %c0_i32 = arith.constant 0 : i32
    %c0_i32_0 = arith.constant 0 : i32
    %c0_i32_1 = arith.constant 0 : i32
    return %1, %c0_i32, %c0_i32_0 : i32, i32, i32
  }
  func.func @transform_2(%arg0: i32, %arg1: i32, %arg2: memref<2xi32, #tpu.memory_space<smem>>, %arg3: memref<2xi32, #tpu.memory_space<smem>>) -> (i32, i32, i32) {
    %0 = arith.index_cast %arg0 : i32 to index
    %1 = memref.load %arg3[%0] : memref<2xi32, #tpu.memory_space<smem>>
    %c0_i32 = arith.constant 0 : i32
    %c0_i32_0 = arith.constant 0 : i32
    %c0_i32_1 = arith.constant 0 : i32
    return %1, %c0_i32, %c0_i32_0 : i32, i32, i32
  }
  func.func @transform_3(%arg0: i32, %arg1: i32, %arg2: memref<2xi32, #tpu.memory_space<smem>>, %arg3: memref<2xi32, #tpu.memory_space<smem>>) -> (i32, i32, i32) {
    %0 = arith.index_cast %arg0 : i32 to index
    %1 = memref.load %arg3[%0] : memref<2xi32, #tpu.memory_space<smem>>
    %c0_i32 = arith.constant 0 : i32
    %c0_i32_0 = arith.constant 0 : i32
    %c0_i32_1 = arith.constant 0 : i32
    return %1, %c0_i32, %c0_i32_0 : i32, i32, i32
  }
  func.func @transform_4(%arg0: i32, %arg1: i32, %arg2: memref<2xi32, #tpu.memory_space<smem>>, %arg3: memref<2xi32, #tpu.memory_space<smem>>) -> (i32, i32, i32) {
    %0 = arith.index_cast %arg0 : i32 to index
    %1 = memref.load %arg2[%0] : memref<2xi32, #tpu.memory_space<smem>>
    %c0_i32 = arith.constant 0 : i32
    %c0_i32_0 = arith.constant 0 : i32
    return %1, %arg1, %c0_i32 : i32, i32, i32
  }
  func.func @transform_5(%arg0: i32, %arg1: i32, %arg2: memref<2xi32, #tpu.memory_space<smem>>, %arg3: memref<2xi32, #tpu.memory_space<smem>>) -> (i32, i32, i32, i32) {
    %0 = arith.index_cast %arg0 : i32 to index
    %1 = memref.load %arg2[%0] : memref<2xi32, #tpu.memory_space<smem>>
    %c0_i32 = arith.constant 0 : i32
    %c0_i32_0 = arith.constant 0 : i32
    %c0_i32_1 = arith.constant 0 : i32
    return %1, %arg1, %c0_i32, %c0_i32_0 : i32, i32, i32, i32
  }
}

</mosaic_0001>

<llo_original>
// kernel: tpu_custom_call.1
$region0: #{tpu_custom_call.1}
  #allocation0 [shape = 'u32[]', space=smem, size = 0x4, offset = 0x4, fixed_abs, tag = 'smem constant byte address 0x4 - core index']
  #allocation1 [shape = 'u32[72,128]{1,0:T(1,128)}', space=vmem, size = 0x9000, scoped, tag = 'internal scratch']
  #allocation2 [shape = 's32[1]{0}', space=sflag, size = 0x4, scoped, tag = 'scoped memory for tpu_custom_call.1']
  #allocation3 [shape = 'u8[512]{0}', space=smem, size = 0x200, scoped, tag = 'prefetched SMEM operand 0']
  #allocation4 [shape = 'u8[512]{0}', space=smem, size = 0x200, scoped, tag = 'prefetched SMEM operand 1']
  %s0 = inlined_call_operand.vmem [shape: s32[2], index: 0, kind: input, shape index: {}]
  %s1 = inlined_call_operand.vmem [shape: s32[2], index: 1, kind: input, shape index: {}]
  %s2 = inlined_call_operand.vmem [shape: f32[2,16,32], index: 2, kind: input, shape index: {}]
  %s3 = inlined_call_operand.vmem [shape: f32[2,32,128], index: 3, kind: input, shape index: {}]
  %s4 = inlined_call_operand.vmem [shape: f32[2,1,128], index: 4, kind: input, shape index: {}]
  %s5 = inlined_call_operand.vmem [shape: f32[2,128,32], index: 5, kind: input, shape index: {}]
  %s6 = inlined_call_operand.hbm [shape: f32[2,16,32], index: 6, kind: output, shape index: {0}]
  %s7 = inlined_call_operand.hbm [shape: f32[2,1,1,32], index: 7, kind: output, shape index: {1}]
  %8 = xla_tuple %s6, %s7
  %s9 = sld [smem:[#allocation0]]
  $region57: #{tpu_custom_call.1} parent=0
    _
  %s11 = ssub.s32 1, %s9
  %s12 = scalar_select 0, %s11, %s9
  %s14 = sshll.u32 %s0, 4
  %s15 = int_to_ptr.vmem [resolvable:$true] %s14
  %17 = dma.vmem_to_smem %s15, 16, [#allocation3], [#allocation2]
  %s19 = sshll.u32 %s1, 4
  %s20 = int_to_ptr.vmem [resolvable:$true] %s19
  %22 = dma.vmem_to_smem %s20, 16, [#allocation4], [#allocation2]
  %24 = dma.done [#allocation2], 32
  %25 = sfence
  $region1: #{tpu_custom_call.1} parent=0
    #allocation5 [shape = 'u8[16384]{0}', space=vmem, size = 0x4000, scoped, tag = 'output window, operand 0']
    #allocation6 [shape = 's32[2]{0}', space=sflag, size = 0x8, scoped, tag = 'scoped memory for tpu_custom_call.1']
    #allocation7 [shape = 'u8[1024]{0}', space=vmem, size = 0x400, scoped, tag = 'output window, operand 1']
    #allocation8 [shape = 's32[2]{0}', space=sflag, size = 0x8, scoped, tag = 'scoped memory for tpu_custom_call.1']
    %26 = vsyncpa [#allocation6], 0
    %s27 = scalar_lea.sflag [#allocation6], 1
    %28 = vsyncpa %s27, 0
    %29 = vsyncpa [#allocation8], 0
    %s30 = scalar_lea.sflag [#allocation8], 1
    %31 = vsyncpa %s30, 0
    loop: start=0, step=1, limit=4
    $region2: #{tpu_custom_call.1} parent=1 // loop_pre_header
      _
    $region3: #{tpu_custom_call.1} parent=1 // loop_header
      %s33 = sphi 0, %s37
      %p34 = scmp.ge.s32.totalorder %s33, 4
      %s40 = sphi 0, %s52
      %s41 = sphi 0, %s48
      %s42 = sphi 0, %s40
      %s43 = sphi 0, %s41
      %s44 = sphi 0, %s42
      %s45 = sphi 0, %s43
      %s59 = sphi 0, %s61
      %s62 = sphi 0, %s59
      %s63 = sphi 0, %s62
      %s79 = sphi 0, %s63
      %s87 = sphi 0, %s89
      %s90 = sphi 0, %s87
      %s91 = sphi 0, %s90
      %s107 = sphi 0, %s91
      %s115 = sphi 0, %s117
      %s118 = sphi 0, %s115
      %s119 = sphi 0, %s118
      %s135 = sphi 0, %s119
      %s143 = sphi 0, %s145
      %s146 = sphi 0, %s143
      %s147 = sphi 0, %s146
      %s163 = sphi 0, %s147
      %s173 = sphi 0, %s175
      %s176 = sphi 0, %s173
      %s177 = sphi 0, %s176
      %s193 = sphi 0, %s177
      %s203 = sphi 0, %s205
      %s206 = sphi 0, %s203
      %s207 = sphi 0, %s206
      %s223 = sphi 0, %s207
    $region4: #{tpu_custom_call.1} parent=1 // loop_header_branch
      %36 = sbr.rel (%p34) target = $region8
    $region5: #{tpu_custom_call.1} parent=1 // loop_body
      %s38 = ssub.s32 %s33, 1
      %s39 = ssub.s32 %s33, 2
      %s46 = sadd.s32 1, %s41
      %p47 = scmp.ge.s32.totalorder %s46, 1
      %s48 = scalar_select %p47, 0, %s46
      %s49 = sadd.s32 1, %s40
      %s50 = scalar_select %p47, %s49, %s40
      %p51 = scmp.ge.s32.totalorder %s50, 2
      %s52 = scalar_select %p51, 0, %s50
      %s53 = sld [smem:[#allocation3 + %s40]]
      %s54 = sld [smem:[#allocation3 + %s52]]
      %s55 = ssub.s32 %s53, %s54
      %s56 = ssub.s32 %s41, %s48
      %s57 = sor.u32 %s55, %s56
      %p58 = scmp.eq.s32.totalorder %s57, 0
      %s60 = sadd.s32 %s59, 1
      %s61 = scalar_select %p58, %s59, %s60
      %p64 = pneg %p58
      %p65 = scmp.eq.s32.totalorder %s33, 1
      %p66 = por %p64, %p65
      %p67 = scmp.ne.s32.totalorder %s59, %s62
      %p68 = scmp.eq.s32.totalorder %s33, 0
      %p69 = por %p67, %p68
      %p70 = scmp.ne.s32.totalorder %s59, %s62
      %p71 = scmp.eq.s32.totalorder %s38, 1
      %p72 = por %p70, %p71
      %p73 = scmp.ne.s32.totalorder %s62, %s63
      %p74 = scmp.eq.s32.totalorder %s38, 0
      %p75 = por %p73, %p74
      %p76 = scmp.ne.s32.totalorder %s62, %s63
      %p77 = scmp.eq.s32.totalorder %s39, 1
      %p78 = por %p76, %p77
      %p80 = scmp.ne.s32.totalorder %s63, %s79
      %p81 = scmp.eq.s32.totalorder %s39, 0
      %p82 = por %p80, %p81
      %s83 = sld [smem:[#allocation4 + %s40]]
      %s84 = sld [smem:[#allocation4 + %s52]]
      %s85 = ssub.s32 %s83, %s84
      %p86 = scmp.eq.s32.totalorder %s85, 0
      %s88 = sadd.s32 %s87, 1
      %s89 = scalar_select %p86, %s87, %s88
      %p92 = pneg %p86
      %p93 = scmp.eq.s32.totalorder %s33, 1
      %p94 = por %p92, %p93
      %p95 = scmp.ne.s32.totalorder %s87, %s90
      %p96 = scmp.eq.s32.totalorder %s33, 0
      %p97 = por %p95, %p96
      %p98 = scmp.ne.s32.totalorder %s87, %s90
      %p99 = scmp.eq.s32.totalorder %s38, 1
      %p100 = por %p98, %p99
      %p101 = scmp.ne.s32.totalorder %s90, %s91
      %p102 = scmp.eq.s32.totalorder %s38, 0
      %p103 = por %p101, %p102
      %p104 = scmp.ne.s32.totalorder %s90, %s91
      %p105 = scmp.eq.s32.totalorder %s39, 1
      %p106 = por %p104, %p105
      %p108 = scmp.ne.s32.totalorder %s91, %s107
      %p109 = scmp.eq.s32.totalorder %s39, 0
      %p110 = por %p108, %p109
      %s111 = sld [smem:[#allocation4 + %s40]]
      %s112 = sld [smem:[#allocation4 + %s52]]
      %s113 = ssub.s32 %s111, %s112
      %p114 = scmp.eq.s32.totalorder %s113, 0
      %s116 = sadd.s32 %s115, 1
      %s117 = scalar_select %p114, %s115, %s116
      %p120 = pneg %p114
      %p121 = scmp.eq.s32.totalorder %s33, 1
      %p122 = por %p120, %p121
      %p123 = scmp.ne.s32.totalorder %s115, %s118
      %p124 = scmp.eq.s32.totalorder %s33, 0
      %p125 = por %p123, %p124
      %p126 = scmp.ne.s32.totalorder %s115, %s118
      %p127 = scmp.eq.s32.totalorder %s38, 1
      %p128 = por %p126, %p127
      %p129 = scmp.ne.s32.totalorder %s118, %s119
      %p130 = scmp.eq.s32.totalorder %s38, 0
      %p131 = por %p129, %p130
      %p132 = scmp.ne.s32.totalorder %s118, %s119
      %p133 = scmp.eq.s32.totalorder %s39, 1
      %p134 = por %p132, %p133
      %p136 = scmp.ne.s32.totalorder %s119, %s135
      %p137 = scmp.eq.s32.totalorder %s39, 0
      %p138 = por %p136, %p137
      %s139 = sld [smem:[#allocation4 + %s40]]
      %s140 = sld [smem:[#allocation4 + %s52]]
      %s141 = ssub.s32 %s139, %s140
      %p142 = scmp.eq.s32.totalorder %s141, 0
      %s144 = sadd.s32 %s143, 1
      %s145 = scalar_select %p142, %s143, %s144
      %p148 = pneg %p142
      %p149 = scmp.eq.s32.totalorder %s33, 1
      %p150 = por %p148, %p149
      %p151 = scmp.ne.s32.totalorder %s143, %s146
      %p152 = scmp.eq.s32.totalorder %s33, 0
      %p153 = por %p151, %p152
      %p154 = scmp.ne.s32.totalorder %s143, %s146
      %p155 = scmp.eq.s32.totalorder %s38, 1
      %p156 = por %p154, %p155
      %p157 = scmp.ne.s32.totalorder %s146, %s147
      %p158 = scmp.eq.s32.totalorder %s38, 0
      %p159 = por %p157, %p158
      %p160 = scmp.ne.s32.totalorder %s146, %s147
      %p161 = scmp.eq.s32.totalorder %s39, 1
      %p162 = por %p160, %p161
      %p164 = scmp.ne.s32.totalorder %s147, %s163
      %p165 = scmp.eq.s32.totalorder %s39, 0
      %p166 = por %p164, %p165
      %s167 = sld [smem:[#allocation3 + %s40]]
      %s168 = sld [smem:[#allocation3 + %s52]]
      %s169 = ssub.s32 %s167, %s168
      %s170 = ssub.s32 %s41, %s48
      %s171 = sor.u32 %s169, %s170
      %p172 = scmp.eq.s32.totalorder %s171, 0
      %s174 = sadd.s32 %s173, 1
      %s175 = scalar_select %p172, %s173, %s174
      %p178 = pneg %p172
      %p179 = scmp.eq.s32.totalorder %s33, 1
      %p180 = por %p178, %p179
      %p181 = scmp.ne.s32.totalorder %s173, %s176
      %p182 = scmp.eq.s32.totalorder %s33, 0
      %p183 = por %p181, %p182
      %p184 = scmp.ne.s32.totalorder %s173, %s176
      %p185 = scmp.eq.s32.totalorder %s38, 1
      %p186 = por %p184, %p185
      %p187 = scmp.ne.s32.totalorder %s176, %s177
      %p188 = scmp.eq.s32.totalorder %s38, 0
      %p189 = por %p187, %p188
      %p190 = scmp.ne.s32.totalorder %s176, %s177
      %p191 = scmp.eq.s32.totalorder %s39, 1
      %p192 = por %p190, %p191
      %p194 = scmp.ne.s32.totalorder %s177, %s193
      %p195 = scmp.eq.s32.totalorder %s39, 0
      %p196 = por %p194, %p195
      %s197 = sld [smem:[#allocation3 + %s40]]
      %s198 = sld [smem:[#allocation3 + %s52]]
      %s199 = ssub.s32 %s197, %s198
      %s200 = ssub.s32 %s41, %s48
      %s201 = sor.u32 %s199, %s200
      %p202 = scmp.eq.s32.totalorder %s201, 0
      %s204 = sadd.s32 %s203, 1
      %s205 = scalar_select %p202, %s203, %s204
      %p208 = pneg %p202
      %p209 = scmp.eq.s32.totalorder %s33, 1
      %p210 = por %p208, %p209
      %p211 = scmp.ne.s32.totalorder %s203, %s206
      %p212 = scmp.eq.s32.totalorder %s33, 0
      %p213 = por %p211, %p212
      %p214 = scmp.ne.s32.totalorder %s203, %s206
      %p215 = scmp.eq.s32.totalorder %s38, 1
      %p216 = por %p214, %p215
      %p217 = scmp.ne.s32.totalorder %s206, %s207
      %p218 = scmp.eq.s32.totalorder %s38, 0
      %p219 = por %p217, %p218
      %p220 = scmp.ne.s32.totalorder %s206, %s207
      %p221 = scmp.eq.s32.totalorder %s39, 1
      %p222 = por %p220, %p221
      %p224 = scmp.ne.s32.totalorder %s207, %s223
      %p225 = scmp.eq.s32.totalorder %s39, 0
      %p226 = por %p224, %p225
      %p227 = scmp.le.s32.totalorder 1, %s33
      %p228 = scmp.lt.s32.totalorder %s33, 3
      %p229 = pnand %p227, %p228
      %p230 = pneg %p229
      // Predicated region
      $region9: #{tpu_custom_call.1} parent=5 // pred_check
        _
      $region10: #{tpu_custom_call.1} parent=5 // pred_check_branch
        %232 = sbr.rel (%p229) target = $region12
      $region11: #{tpu_custom_call.1} parent=5 // pred_region
        %s233 = ssub.s32 %s33, 1
      $region12: #{tpu_custom_call.1} parent=5 // pred_fallthru
        _
      %p234 = scmp.lt.s32.totalorder %s33, 2
      // Predicated region
      $region13: #{tpu_custom_call.1} parent=5 // pred_check
        %p235 = pneg %p234
      $region14: #{tpu_custom_call.1} parent=5 // pred_check_branch
        %237 = sbr.rel (%p235) target = $region16
      $region15: #{tpu_custom_call.1} parent=5 // pred_region
        // Predicated region
        $region17: #{tpu_custom_call.1} parent=15 // pred_check
          %p238 = pneg %p69
        $region18: #{tpu_custom_call.1} parent=15 // pred_check_branch
          %240 = sbr.rel (%p238) target = $region20
        $region19: #{tpu_custom_call.1} parent=15 // pred_region
          %s241 = sld [smem:[#allocation3 + %s40]]
          %s242 = smul.u32 2, %s41
          %p243 = scmp.lt.s32.totalorder %s241, 1
          %s244 = scalar_select %p243, %s241, 1
          %p245 = scmp.lt.s32.totalorder %s242, 1
          %s246 = scalar_select %p245, %s242, 1
          %s247 = smul.addr %s244, 2
          %s248 = sadd.s32 %s246, %s247
          %s249 = smul.addr %s248, 8
          %s250 = scalar_lea.vmem %s2, %s249
          %s251 = sld [smem:[#allocation3 + %s40]]
          %s252 = smul.u32 2, %s41
        $region20: #{tpu_custom_call.1} parent=15 // pred_fallthru
          _
        // Predicated region
        $region21: #{tpu_custom_call.1} parent=15 // pred_check
          %p253 = pneg %p97
        $region22: #{tpu_custom_call.1} parent=15 // pred_check_branch
          %255 = sbr.rel (%p253) target = $region24
        $region23: #{tpu_custom_call.1} parent=15 // pred_region
          %s256 = sld [smem:[#allocation4 + %s40]]
          %p257 = scmp.lt.s32.totalorder %s256, 1
          %s258 = scalar_select %p257, %s256, 1
          %s259 = smul.addr %s258, 4
          %s260 = smul.addr %s259, 8
          %s261 = scalar_lea.vmem %s3, %s260
          %s262 = sld [smem:[#allocation4 + %s40]]
        $region24: #{tpu_custom_call.1} parent=15 // pred_fallthru
          _
        // Predicated region
        $region25: #{tpu_custom_call.1} parent=15 // pred_check
          %p263 = pneg %p125
        $region26: #{tpu_custom_call.1} parent=15 // pred_check_branch
          %265 = sbr.rel (%p263) target = $region28
        $region27: #{tpu_custom_call.1} parent=15 // pred_region
          %s266 = sld [smem:[#allocation4 + %s40]]
          %p267 = scmp.lt.s32.totalorder %s266, 1
          %s268 = scalar_select %p267, %s266, 1
          %s269 = scalar_lea.vmem %s4, %s268
          %s270 = sld [smem:[#allocation4 + %s40]]
        $region28: #{tpu_custom_call.1} parent=15 // pred_fallthru
          _
        // Predicated region
        $region29: #{tpu_custom_call.1} parent=15 // pred_check
          %p271 = pneg %p153
        $region30: #{tpu_custom_call.1} parent=15 // pred_check_branch
          %273 = sbr.rel (%p271) target = $region32
        $region31: #{tpu_custom_call.1} parent=15 // pred_region
          %s274 = sld [smem:[#allocation4 + %s40]]
          %p275 = scmp.lt.s32.totalorder %s274, 1
          %s276 = scalar_select %p275, %s274, 1
          %s277 = smul.addr %s276, 16
          %s278 = smul.addr %s277, 8
          %s279 = scalar_lea.vmem %s5, %s278
          %s280 = sld [smem:[#allocation4 + %s40]]
        $region32: #{tpu_custom_call.1} parent=15 // pred_fallthru
          _
      $region16: #{tpu_custom_call.1} parent=5 // pred_fallthru
        _
      %p281 = scmp.le.s32.totalorder 1, %s33
      %p282 = scmp.lt.s32.totalorder %s33, 3
      %p283 = pnand %p281, %p282
      %p284 = pneg %p283
      // Predicated region
      $region33: #{tpu_custom_call.1} parent=5 // pred_check
        _
      $region34: #{tpu_custom_call.1} parent=5 // pred_check_branch
        %286 = sbr.rel (%p283) target = $region36
      $region35: #{tpu_custom_call.1} parent=5 // pred_region
        %s287 = ssub.s32 %s33, 1
        %s288 = sld [smem:[#allocation3 + %s42]]
        %s289 = smul.u32 2, %s43
        %p290 = scmp.lt.s32.totalorder %s288, 1
        %s291 = scalar_select %p290, %s288, 1
        %p292 = scmp.lt.s32.totalorder %s289, 1
        %s293 = scalar_select %p292, %s289, 1
        %s294 = smul.addr %s291, 2
        %s295 = sadd.s32 %s293, %s294
        %s296 = smul.addr %s295, 8
        %s297 = scalar_lea.vmem %s2, %s296
        %p298 = pneg %p75
        %p299 = pneg %p72
        %s300 = sld [smem:[#allocation4 + %s42]]
        %p301 = scmp.lt.s32.totalorder %s300, 1
        %s302 = scalar_select %p301, %s300, 1
        %s303 = smul.addr %s302, 4
        %s304 = smul.addr %s303, 8
        %s305 = scalar_lea.vmem %s3, %s304
        %p306 = pneg %p103
        %p307 = pneg %p100
        %s308 = sld [smem:[#allocation4 + %s42]]
        %p309 = scmp.lt.s32.totalorder %s308, 1
        %s310 = scalar_select %p309, %s308, 1
        %s311 = scalar_lea.vmem %s4, %s310
        %p312 = pneg %p131
        %p313 = pneg %p128
        %s314 = sld [smem:[#allocation4 + %s42]]
        %p315 = scmp.lt.s32.totalorder %s314, 1
        %s316 = scalar_select %p315, %s314, 1
        %s317 = smul.addr %s316, 16
        %s318 = smul.addr %s317, 8
        %s319 = scalar_lea.vmem %s5, %s318
        %p320 = pneg %p159
        %p321 = pneg %p156
        %p322 = pneg %p189
        %p323 = pneg %p186
        %s324 = sand.u32 %s176, 1
        %s325 = scalar_lea.sflag [#allocation6], %s324
        %s326 = sand.u32 %s176, 1
        %s327 = smul.addr %s326, 16
        %s328 = scalar_lea.vmem [#allocation5], %s327
        %p329 = pneg %p219
        %p330 = pneg %p216
        %s331 = sand.u32 %s206, 1
        %s332 = scalar_lea.sflag [#allocation8], %s331
        %s333 = sand.u32 %s206, 1
        %s334 = scalar_lea.vmem [#allocation7], %s333
        %s335 = sld [smem:[#allocation3 + %s42]]
        %s336 = smul.u32 2, %s43
        %p337 = scmp.lt.s32.totalorder %s335, 1
        %s338 = scalar_select %p337, %s335, 1
        %p339 = scmp.lt.s32.totalorder %s336, 1
        %s340 = scalar_select %p339, %s336, 1
        %s341 = smul.addr %s338, 2
        %s342 = sadd.s32 %s340, %s341
        %s343 = smul.addr %s342, 8
        %s344 = scalar_lea.vmem %s2, %s343
        %s345 = sld [smem:[#allocation3 + %s42]]
        %s346 = smul.u32 2, %s43
        %s347 = sld [smem:[#allocation4 + %s42]]
        %p348 = scmp.lt.s32.totalorder %s347, 1
        %s349 = scalar_select %p348, %s347, 1
        %s350 = smul.addr %s349, 4
        %s351 = smul.addr %s350, 8
        %s352 = scalar_lea.vmem %s3, %s351
        %s353 = sld [smem:[#allocation4 + %s42]]
        %s354 = sld [smem:[#allocation4 + %s42]]
        %p355 = scmp.lt.s32.totalorder %s354, 1
        %s356 = scalar_select %p355, %s354, 1
        %s357 = scalar_lea.vmem %s4, %s356
        %s358 = sld [smem:[#allocation4 + %s42]]
        %s359 = sld [smem:[#allocation4 + %s42]]
        %p360 = scmp.lt.s32.totalorder %s359, 1
        %s361 = scalar_select %p360, %s359, 1
        %s362 = smul.addr %s361, 16
        %s363 = smul.addr %s362, 8
        %s364 = scalar_lea.vmem %s5, %s363
        %s365 = sld [smem:[#allocation4 + %s42]]
        %s366 = sld [smem:[#allocation3 + %s42]]
        %s367 = smul.u32 2, %s43
        %s368 = sld [smem:[#allocation3 + %s42]]
        %v369 = vld [vmem:[%s344] sm:$0xff]
        %v370 = vld [vmem:[%s344 + $0x8] sm:$0xff]
        %v371 = vld [vmem:[%s352] sm:$0xff]
        %v372 = vld [vmem:[%s352 + $0x8] sm:$0xff]
        %v373 = vld [vmem:[%s352 + $0x10] sm:$0xff]
        %v374 = vld [vmem:[%s352 + $0x18] sm:$0xff]
        %v375 = vld [vmem:[%s357] sm:$0x1]
        %v376 = vld [vmem:[%s364] sm:$0xff]
        %v377 = vld [vmem:[%s364 + $0x8] sm:$0xff]
        %v378 = vld [vmem:[%s364 + $0x10] sm:$0xff]
        %v379 = vld [vmem:[%s364 + $0x18] sm:$0xff]
        %v380 = vld [vmem:[%s364 + $0x20] sm:$0xff]
        %v381 = vld [vmem:[%s364 + $0x28] sm:$0xff]
        %v382 = vld [vmem:[%s364 + $0x30] sm:$0xff]
        %v383 = vld [vmem:[%s364 + $0x38] sm:$0xff]
        %v384 = vld [vmem:[%s364 + $0x40] sm:$0xff]
        %v385 = vld [vmem:[%s364 + $0x48] sm:$0xff]
        %v386 = vld [vmem:[%s364 + $0x50] sm:$0xff]
        %v387 = vld [vmem:[%s364 + $0x58] sm:$0xff]
        %v388 = vld [vmem:[%s364 + $0x60] sm:$0xff]
        %v389 = vld [vmem:[%s364 + $0x68] sm:$0xff]
        %v390 = vld [vmem:[%s364 + $0x70] sm:$0xff]
        %v391 = vld [vmem:[%s364 + $0x78] sm:$0xff]
        %vm392 = vcmask 261120
        %v394 = vsel %vm392, %v369, 0
        %v397 = vsel %vm392, %v370, 0
        %399 = vmatpush.msra.mxu0 0.0
        %400 = vmatpush.msra.mxu0 0.0
        %401 = vmatpush.msra.mxu0 0.0
        %402 = vmatpush.msra.mxu0 0.0
        %403 = vmatpush.msra.mxu0 0.0
        %404 = vmatpush.msra.mxu0 0.0
        %405 = vmatpush.msra.mxu0 0.0
        %406 = vmatpush.msra.mxu0 0.0
        %407 = vmatpush.msra.mxu0 0.0
        %408 = vmatpush.msra.mxu0 0.0
        %409 = vmatpush.msra.mxu0 0.0
        %410 = vmatpush.msra.mxu0 0.0
        %411 = vmatpush.msra.mxu0 %v374
        %412 = vmatpush.msra.mxu0 %v373
        %413 = vmatpush.msra.mxu0 %v372
        %414 = vmatpush.msra.mxu0 %v371
        %415 = vmatmul.f32.gmra.mxu0 %v394
        %v416 = vpop.f32.mrf.mxu0
        %v417 = vadd.f32 0.0, %v416
        %418 = vmatmul.f32.gmra.mxu0 %v397
        %v419 = vpop.f32.mrf.mxu0
        %v420 = vadd.f32 0.0, %v419
        %421 = vdwg.mxu0
        %v423 = vperm.slane %v375, 0
        %v425 = vsub.f32 %v423, %v417
        %v426 = vsub.f32 %v423, %v420
        %v427 = vlaneseq
        %v428 = vand.u32 %v427, 127
        %429 = vmin.xlane.f32.xlu0 %v425
        %v430 = vpop.xlane.xlu0 %429
        %431 = vmin.xlane.f32.xlu0 %v426
        %v432 = vpop.xlane.xlu0 %431
        %vm433 = vcmp.eq.f32.partialorder %v425, %v430
        %vm434 = vcmp.eq.f32.partialorder %v426, %v432
        %v435 = vsel %vm433, %v428, 128
        %v436 = vsel %vm434, %v428, 128
        %v437 = vand.u32 %v435, 65535
        %v438 = vshra.s32 %v435, 16
        %v439 = vcvt.s32.f32 %v437
        %v440 = vcvt.s32.f32 %v438
        %441 = vmin.xlane.f32.xlu0 %v440
        %v442 = vpop.xlane.xlu0 %441
        %vm443 = vcmp.eq.f32.partialorder %v440, %v442
        %v444 = vsel %vm443, %v439, inf
        %445 = vmin.xlane.f32.xlu0 %v444
        %v446 = vpop.xlane.xlu0 %445
        %v447 = vcvt.f32.s32 %v446
        %v448 = vcvt.f32.s32 %v442
        %v449 = vshll.u32 %v448, 16
        %v450 = vadd.s32 %v449, %v447
        %v451 = vand.u32 %v436, 65535
        %v452 = vshra.s32 %v436, 16
        %v453 = vcvt.s32.f32 %v451
        %v454 = vcvt.s32.f32 %v452
        %455 = vmin.xlane.f32.xlu0 %v454
        %v456 = vpop.xlane.xlu0 %455
        %vm457 = vcmp.eq.f32.partialorder %v454, %v456
        %v458 = vsel %vm457, %v453, inf
        %459 = vmin.xlane.f32.xlu0 %v458
        %v460 = vpop.xlane.xlu0 %459
        %v461 = vcvt.f32.s32 %v460
        %v462 = vcvt.f32.s32 %v456
        %v463 = vshll.u32 %v462, 16
        %v464 = vadd.s32 %v463, %v461
        %vm465 = vcmp.eq.s32.totalorder %v428, %v450
        %vm466 = vcmp.eq.s32.totalorder %v428, %v464
        %v467 = vsel %vm465, 1, 0
        %v468 = vsel %vm466, 1, 0
        %v469 = vcvt.s32.f32 %v467
        %v470 = vcvt.s32.f32 %v468
        %471 = vmatpush.msra.mxu0 %v391
        %472 = vmatpush.msra.mxu0 %v390
        %473 = vmatpush.msra.mxu0 %v389
        %474 = vmatpush.msra.mxu0 %v388
        %475 = vmatpush.msra.mxu0 %v387
        %476 = vmatpush.msra.mxu0 %v386
        %477 = vmatpush.msra.mxu0 %v385
        %478 = vmatpush.msra.mxu0 %v384
        %479 = vmatpush.msra.mxu0 %v383
        %480 = vmatpush.msra.mxu0 %v382
        %481 = vmatpush.msra.mxu0 %v381
        %482 = vmatpush.msra.mxu0 %v380
        %483 = vmatpush.msra.mxu0 %v379
        %484 = vmatpush.msra.mxu0 %v378
        %485 = vmatpush.msra.mxu0 %v377
        %486 = vmatpush.msra.mxu0 %v376
        %487 = vmatmul.f32.gmra.mxu0 %v469
        %v488 = vpop.f32.mrf.mxu0
        %v489 = vadd.f32 0.0, %v488
        %490 = vmatmul.f32.gmra.mxu0 %v470
        %v491 = vpop.f32.mrf.mxu0
        %v492 = vadd.f32 0.0, %v491
        %493 = vdwg.mxu0
        %494 = vst.msk [vmem:[%s328] sm:$0xff] %vm392, %v489
        %495 = vst.msk [vmem:[%s328 + $0x8] sm:$0xff] %vm392, %v492
        %v496 = vsub.f32 %v489, %v369
        %v497 = vsub.f32 %v492, %v370
        %v498 = vmul.f32 %v496, %v496
        %v499 = vmul.f32 %v497, %v497
        %v500 = vsel %vm392, %v498, 0.0
        %v501 = vsel %vm392, %v499, 0.0
        %v502 = vadd.f32 %v500, %v501
        %v503 = vrot.slane %v502, 4
        %v504 = vadd.f32 %v502, %v503
        %v505 = vrot.slane %v504, 2
        %v506 = vadd.f32 %v504, %v505
        %v507 = vrot.slane %v506, 1
        %v508 = vadd.f32 %v506, %v507
        %vm509 = vcmask 253952
        %510 = vst.msk [vmem:[%s334] sm:$0x1] %vm509, %v508
        %s511 = sand.u32 %s176, 1
        %s512 = scalar_lea.sflag [#allocation6], %s511
        %s513 = sand.u32 %s176, 1
        %s514 = smul.addr %s513, 16
        %s515 = scalar_lea.vmem [#allocation5], %s514
        %s516 = sand.u32 %s206, 1
        %s517 = scalar_lea.sflag [#allocation8], %s516
        %s518 = sand.u32 %s206, 1
        %s519 = scalar_lea.vmem [#allocation7], %s518
        // Predicated region
        $region37: #{tpu_custom_call.1} parent=35 // pred_check
          %p520 = pneg %p186
        $region38: #{tpu_custom_call.1} parent=35 // pred_check_branch
          %522 = sbr.rel (%p520) target = $region40
        $region39: #{tpu_custom_call.1} parent=35 // pred_region
          %s523 = sld [smem:[#allocation3 + %s42]]
          %s524 = smul.u32 2, %s43
          %526 = vsyncadd %s512, 0
          %s527 = smul.addr %s523, 2
          %s528 = sadd.s32 %s524, %s527
          %s529 = smul.addr %s528, 8
          %s530 = scalar_lea.hbm %s6, %s529
          %s531 = sshll.u32 %s515, 4
          %s532 = int_to_ptr.vmem [resolvable:$true] %s531
          %s533 = sshll.u32 %s530, 4
          %s534 = int_to_ptr.hbm [resolvable:$true] %s533
          %539 = dma.vmem_to_hbm [thread:$0]  %s532, 256, %s534, %s512, 128, 128, 8
        $region40: #{tpu_custom_call.1} parent=35 // pred_fallthru
          _
        // Predicated region
        $region41: #{tpu_custom_call.1} parent=35 // pred_check
          %p540 = pneg %p216
        $region42: #{tpu_custom_call.1} parent=35 // pred_check_branch
          %542 = sbr.rel (%p540) target = $region44
        $region43: #{tpu_custom_call.1} parent=35 // pred_region
          %s543 = sld [smem:[#allocation3 + %s42]]
          %545 = vsyncadd %s517, 0
          %s546 = sadd.s32 %s43, %s543
          %s547 = scalar_lea.hbm %s7, %s546
          %s549 = sshll.u32 %s519, 4
          %s550 = int_to_ptr.vmem [resolvable:$true] %s549
          %s551 = sshll.u32 %s547, 4
          %s552 = int_to_ptr.hbm [resolvable:$true] %s551
          %554 = dma.vmem_to_hbm [thread:$0]  %s550, 16, %s552, %s517
        $region44: #{tpu_custom_call.1} parent=35 // pred_fallthru
          _
      $region36: #{tpu_custom_call.1} parent=5 // pred_fallthru
        _
      %p555 = scmp.le.s32.totalorder 2, %s33
      // Predicated region
      $region45: #{tpu_custom_call.1} parent=5 // pred_check
        %p556 = pneg %p555
      $region46: #{tpu_custom_call.1} parent=5 // pred_check_branch
        %558 = sbr.rel (%p556) target = $region48
      $region47: #{tpu_custom_call.1} parent=5 // pred_region
        %s559 = ssub.s32 %s33, 2
        // Predicated region
        $region49: #{tpu_custom_call.1} parent=47 // pred_check
          %p560 = pneg %p192
        $region50: #{tpu_custom_call.1} parent=47 // pred_check_branch
          %562 = sbr.rel (%p560) target = $region52
        $region51: #{tpu_custom_call.1} parent=47 // pred_region
          %s563 = sand.u32 %s177, 1
          %s564 = scalar_lea.sflag [#allocation6], %s563
          %s565 = sand.u32 %s177, 1
          %s566 = smul.addr %s565, 16
          %s567 = scalar_lea.vmem [#allocation5], %s566
          %569 = dma.done %s564, 256
        $region52: #{tpu_custom_call.1} parent=47 // pred_fallthru
          _
        // Predicated region
        $region53: #{tpu_custom_call.1} parent=47 // pred_check
          %p570 = pneg %p222
        $region54: #{tpu_custom_call.1} parent=47 // pred_check_branch
          %572 = sbr.rel (%p570) target = $region56
        $region55: #{tpu_custom_call.1} parent=47 // pred_region
          %s573 = sand.u32 %s207, 1
          %s574 = scalar_lea.sflag [#allocation8], %s573
          %s575 = sand.u32 %s207, 1
          %s576 = scalar_lea.vmem [#allocation7], %s575
          %578 = dma.done %s574, 16
        $region56: #{tpu_custom_call.1} parent=47 // pred_fallthru
          _
      $region48: #{tpu_custom_call.1} parent=5 // pred_fallthru
        _
    $region6: #{tpu_custom_call.1} parent=1 // loop_footer
      %s37 = sadd.s32 1, %s33
    $region7: #{tpu_custom_call.1} parent=1 // loop_footer_branch
      %32 = sbr.rel target = $region3
    $region8: #{tpu_custom_call.1} parent=1 // loop_exit
      _
    %579 = vsyncpa [#allocation6], 1
    %s580 = scalar_lea.sflag [#allocation6], 1
    %581 = vsyncpa %s580, 1
    %582 = vsyncpa [#allocation8], 1
    %s583 = scalar_lea.sflag [#allocation8], 1
    %584 = vsyncpa %s583, 1

</llo_original>
